<compile_context>
chip_gen: v5e
topology: v5e:2x2
jax: 0.10.0
libtpu: 0.0.40
codegen_flags: <defaults>
</compile_context>

<pallas_src>
import jax
import jax.numpy as jnp
from jax.experimental import pallas as pl
from jax.experimental.pallas import tpu as pltpu

# Logical model sizes (matches the PyTorch module).
N_OBS = 8
N_ACT = 4
H1, H2 = 120, 84

# Lane-padded hidden sizes (padded entries are zero -> math unchanged through ReLU).
H1P = 128
H2P = 128

MAX_TILE_B = 2048     # upper bound on the batch tile
MIN_GRID_STEPS = 4    # aim for >=4 steps on large batches (v7x megacore + overlap)


def _round_up(x, m):
    return ((x + m - 1) // m) * m


def _pick_tile_b(batch):
    """Batch tile: single 16-row-aligned tile for small batches; otherwise a tile
    sized so the grid has >= MIN_GRID_STEPS steps, capped at MAX_TILE_B."""
    if batch <= 512:
        return max(16, _round_up(batch, 16))
    tile = _round_up(-(-batch // MIN_GRID_STEPS), 16)
    return min(MAX_TILE_B, tile)


def qnet_kernel(x_ref, w1_ref, b1_ref, w2_ref, b2_ref, w3_ref, b3_ref, o_ref):
    # Fused MLP: 3 MXU matmuls + f32 bias add + ReLU, all resident in VMEM.
    x = x_ref[...]  # bf16 [TILE_B, N_OBS]

    h1 = jnp.dot(x, w1_ref[...], preferred_element_type=jnp.float32) + b1_ref[...]
    h1 = jnp.maximum(h1, 0.0).astype(jnp.bfloat16)

    h2 = jnp.dot(h1, w2_ref[...], preferred_element_type=jnp.float32) + b2_ref[...]
    h2 = jnp.maximum(h2, 0.0).astype(jnp.bfloat16)

    out = jnp.dot(h2, w3_ref[...], preferred_element_type=jnp.float32) + b3_ref[...]
    o_ref[...] = out.astype(o_ref.dtype)


def prepare_params(params):
    """One-time weight prep (call OUTSIDE the jitted forward and cache the result):
    zero-pad hidden dims to 128 lanes, weights -> bf16, biases stay f32.
    The final output dim (n_act) is left un-padded."""
    w1p = jnp.pad(params["w1"], ((0, 0), (0, H1P - H1))).astype(jnp.bfloat16)
    b1p = jnp.pad(params["b1"], ((0, 0), (0, H1P - H1))).astype(jnp.float32)
    w2p = jnp.pad(params["w2"], ((0, H1P - H1), (0, H2P - H2))).astype(jnp.bfloat16)
    b2p = jnp.pad(params["b2"], ((0, 0), (0, H2P - H2))).astype(jnp.float32)
    w3p = jnp.pad(params["w3"], ((0, H2P - H2), (0, 0))).astype(jnp.bfloat16)
    b3p = params["b3"].astype(jnp.float32)
    return (w1p, b1p, w2p, b2p, w3p, b3p)


@jax.jit
def qnetwork_forward(x, padded_params):
    """x: [B, n_obs] float32.  padded_params: output of prepare_params()."""
    B, n_obs = x.shape
    assert n_obs == N_OBS, (n_obs, N_OBS)

    w1p, b1p, w2p, b2p, w3p, b3p = padded_params
    n_act = w3p.shape[1]

    tile_b = _pick_tile_b(B)
    B_pad = _round_up(B, tile_b)

    xb = x.astype(jnp.bfloat16)
    if B_pad != B:
        xb = jnp.pad(xb, ((0, B_pad - B), (0, 0)))

    grid = (B_pad // tile_b,)

    flops = 2 * B_pad * (N_OBS * H1P + H1P * H2P + H2P * n_act)
    bytes_accessed = (
        B_pad * N_OBS * 2  # x (bf16)
        + sum(int(a.size) * a.dtype.itemsize for a in padded_params)
        + B_pad * n_act * 4  # output (f32, un-padded)
    )

    out = pl.pallas_call(
        qnet_kernel,
        out_shape=jax.ShapeDtypeStruct((B_pad, n_act), jnp.float32),
        grid_spec=pltpu.PrefetchScalarGridSpec(
            num_scalar_prefetch=0,
            grid=grid,
            in_specs=[
                pl.BlockSpec((tile_b, N_OBS), lambda i: (i, 0)),   # x tile
                pl.BlockSpec((N_OBS, H1P), lambda i: (0, 0)),      # w1 (padded)
                pl.BlockSpec((1, H1P), lambda i: (0, 0)),          # b1
                pl.BlockSpec((H1P, H2P), lambda i: (0, 0)),        # w2
                pl.BlockSpec((1, H2P), lambda i: (0, 0)),          # b2
                pl.BlockSpec((H2P, n_act), lambda i: (0, 0)),      # w3 (real n_act cols)
                pl.BlockSpec((1, n_act), lambda i: (0, 0)),        # b3
            ],
            out_specs=pl.BlockSpec((tile_b, n_act), lambda i: (i, 0)),
        ),
        compiler_params=pltpu.CompilerParams(
            dimension_semantics=("parallel",),
            vmem_limit_bytes=32 * 1024 * 1024,  # headroom for large tiles (v5e default is 16 MiB)
        ),
        cost_estimate=pl.CostEstimate(
            flops=flops, transcendentals=0, bytes_accessed=bytes_accessed
        ),
    )(xb, w1p, b1p, w2p, b2p, w3p, b3p)

    return out[:B]


def init_params(key, n_obs, n_act):
    """PyTorch nn.Linear-style init: U(-1/sqrt(fan_in), 1/sqrt(fan_in))."""
    ks = jax.random.split(key, 6)

    def linear_init(kw, kb, fan_in, fan_out):
        bound = 1.0 / (fan_in ** 0.5)
        w = jax.random.uniform(kw, (fan_in, fan_out), jnp.float32, -bound, bound)
        b = jax.random.uniform(kb, (1, fan_out), jnp.float32, -bound, bound)
        return w, b

    w1, b1 = linear_init(ks[0], ks[1], n_obs, H1)
    w2, b2 = linear_init(ks[2], ks[3], H1, H2)
    w3, b3 = linear_init(ks[4], ks[5], H2, n_act)
    return {"w1": w1, "b1": b1, "w2": w2, "b2": b2, "w3": w3, "b3": b3}


def qnetwork_ref(x, p, cast=None):
    """Pure-JAX reference.  With cast=jnp.bfloat16 it mimics the kernel's
    bf16 input quantization (accumulation stays f32)."""
    def c(a):
        a = jnp.asarray(a)
        if cast is None:
            return a.astype(jnp.float32)
        return a.astype(cast).astype(jnp.float32)

    h1 = jnp.maximum(c(x) @ c(p["w1"]) + p["b1"].astype(jnp.float32), 0.0)
    h2 = jnp.maximum(c(h1) @ c(p["w2"]) + p["b2"].astype(jnp.float32), 0.0)
    return c(h2) @ c(p["w3"]) + p["b3"].astype(jnp.float32)


if __name__ == "__main__":
    key = jax.random.PRNGKey(0)
    k_params, k_x, k_x2 = jax.random.split(key, 3)

    params = init_params(k_params, N_OBS, N_ACT)
    padded = prepare_params(params)  # done once, outside the jitted forward

    # Small-batch path (single tile).
    x = jax.random.normal(k_x, (2, N_OBS), jnp.float32)
    out = jax.block_until_ready(qnetwork_forward(x, padded))
    assert out.shape == (2, N_ACT), out.shape

    ref_q = qnetwork_ref(x, params, cast=jnp.bfloat16)
    assert jnp.allclose(out, ref_q, atol=1e-4, rtol=1e-4), "mismatch vs bf16-quantized ref"
    ref_f32 = qnetwork_ref(x, params)
    assert jnp.allclose(out, ref_f32, atol=5e-2, rtol=5e-2), "mismatch vs f32 reference"

    # Multi-step grid path (exercises batch tiling / row padding).
    x2 = jax.random.normal(k_x2, (600, N_OBS), jnp.float32)
    out2 = jax.block_until_ready(qnetwork_forward(x2, padded))
    assert out2.shape == (600, N_ACT), out2.shape
    ref2_q = qnetwork_ref(x2, params, cast=jnp.bfloat16)
    assert jnp.allclose(out2, ref2_q, atol=1e-3, rtol=1e-3), "batch mismatch vs bf16 ref"

    print("KERNEL_OK")
</pallas_src>

<mosaic_0001>
module attributes {stable_mosaic.version = 11 : i64} {
  func.func @qnet_kernel(%arg0: i32, %arg1: memref<16x8xbf16, #tpu.memory_space<vmem>>, %arg2: memref<8x128xbf16, #tpu.memory_space<vmem>>, %arg3: memref<1x128xf32, #tpu.memory_space<vmem>>, %arg4: memref<128x128xbf16, #tpu.memory_space<vmem>>, %arg5: memref<1x128xf32, #tpu.memory_space<vmem>>, %arg6: memref<128x4xbf16, #tpu.memory_space<vmem>>, %arg7: memref<1x4xf32, #tpu.memory_space<vmem>>, %arg8: memref<16x4xf32, #tpu.memory_space<vmem>>) attributes {dimension_semantics = [#tpu.dimension_semantics<parallel>], iteration_bounds = array<i64: 1>, scalar_prefetch = 0 : i64, scratch_operands = 0 : i64, tpu.core_type = #tpu.core_type<tc>, window_params = [{transform_indices = @transform_0, window_bounds = array<i64: 16, 8>}, {pipeline_mode = #tpu.pipeline_mode<synchronous>, transform_indices = @transform_1, window_bounds = array<i64: 8, 128>}, {pipeline_mode = #tpu.pipeline_mode<synchronous>, transform_indices = @transform_2, window_bounds = array<i64: 1, 128>}, {pipeline_mode = #tpu.pipeline_mode<synchronous>, transform_indices = @transform_3, window_bounds = array<i64: 128, 128>}, {pipeline_mode = #tpu.pipeline_mode<synchronous>, transform_indices = @transform_4, window_bounds = array<i64: 1, 128>}, {pipeline_mode = #tpu.pipeline_mode<synchronous>, transform_indices = @transform_5, window_bounds = array<i64: 128, 4>}, {pipeline_mode = #tpu.pipeline_mode<synchronous>, transform_indices = @transform_6, window_bounds = array<i64: 1, 4>}, {transform_indices = @transform_7, window_bounds = array<i64: 16, 4>}]} {
    %c0 = arith.constant 0 : index
    %c0_0 = arith.constant 0 : index
    %0 = vector.load %arg1[%c0, %c0_0] : memref<16x8xbf16, #tpu.memory_space<vmem>>, vector<16x8xbf16>
    %c0_1 = arith.constant 0 : index
    %c0_2 = arith.constant 0 : index
    %1 = vector.load %arg2[%c0_1, %c0_2] : memref<8x128xbf16, #tpu.memory_space<vmem>>, vector<8x128xbf16>
    %cst = arith.constant dense<0.000000e+00> : vector<16x128xf32>
    %2 = tpu.matmul %0, %1, %cst {dimension_numbers = #tpu.dot_dimension_numbers<[1], [0], [0], [1], [0, 0, 1, 1], [], []>} : vector<16x8xbf16>, vector<8x128xbf16>, vector<16x128xf32> -> vector<16x128xf32>
    %c0_3 = arith.constant 0 : index
    %c0_4 = arith.constant 0 : index
    %3 = vector.load %arg3[%c0_3, %c0_4] : memref<1x128xf32, #tpu.memory_space<vmem>>, vector<1x128xf32>
    %4 = vector.broadcast %3 : vector<1x128xf32> to vector<16x128xf32>
    %5 = arith.addf %2, %4 : vector<16x128xf32>
    %cst_5 = arith.constant 0.000000e+00 : f32
    %6 = vector.broadcast %cst_5 : f32 to vector<16x128xf32>
    %7 = arith.maximumf %5, %6 : vector<16x128xf32>
    %8 = arith.truncf %7 : vector<16x128xf32> to vector<16x128xbf16>
    %c0_6 = arith.constant 0 : index
    %c0_7 = arith.constant 0 : index
    %9 = vector.load %arg4[%c0_6, %c0_7] : memref<128x128xbf16, #tpu.memory_space<vmem>>, vector<128x128xbf16>
    %cst_8 = arith.constant dense<0.000000e+00> : vector<16x128xf32>
    %10 = tpu.matmul %8, %9, %cst_8 {dimension_numbers = #tpu.dot_dimension_numbers<[1], [0], [0], [1], [0, 0, 1, 1], [], []>} : vector<16x128xbf16>, vector<128x128xbf16>, vector<16x128xf32> -> vector<16x128xf32>
    %c0_9 = arith.constant 0 : index
    %c0_10 = arith.constant 0 : index
    %11 = vector.load %arg5[%c0_9, %c0_10] : memref<1x128xf32, #tpu.memory_space<vmem>>, vector<1x128xf32>
    %12 = vector.broadcast %11 : vector<1x128xf32> to vector<16x128xf32>
    %13 = arith.addf %10, %12 : vector<16x128xf32>
    %cst_11 = arith.constant 0.000000e+00 : f32
    %14 = vector.broadcast %cst_11 : f32 to vector<16x128xf32>
    %15 = arith.maximumf %13, %14 : vector<16x128xf32>
    %16 = arith.truncf %15 : vector<16x128xf32> to vector<16x128xbf16>
    %c0_12 = arith.constant 0 : index
    %c0_13 = arith.constant 0 : index
    %17 = vector.load %arg6[%c0_12, %c0_13] : memref<128x4xbf16, #tpu.memory_space<vmem>>, vector<128x4xbf16>
    %cst_14 = arith.constant dense<0.000000e+00> : vector<16x4xf32>
    %18 = tpu.matmul %16, %17, %cst_14 {dimension_numbers = #tpu.dot_dimension_numbers<[1], [0], [0], [1], [0, 0, 1, 1], [], []>} : vector<16x128xbf16>, vector<128x4xbf16>, vector<16x4xf32> -> vector<16x4xf32>
    %c0_15 = arith.constant 0 : index
    %c0_16 = arith.constant 0 : index
    %19 = vector.load %arg7[%c0_15, %c0_16] : memref<1x4xf32, #tpu.memory_space<vmem>>, vector<1x4xf32>
    %20 = vector.broadcast %19 : vector<1x4xf32> to vector<16x4xf32>
    %21 = arith.addf %18, %20 : vector<16x4xf32>
    %c0_17 = arith.constant 0 : index
    %c0_18 = arith.constant 0 : index
    %22 = vector.load %arg8[%c0_17, %c0_18] : memref<16x4xf32, #tpu.memory_space<vmem>>, vector<16x4xf32>
    tpu.vector_store %arg8[%c0_17, %c0_18], %21 {strides = array<i32>} : memref<16x4xf32, #tpu.memory_space<vmem>>, vector<16x4xf32>,
    return
  }
  func.func @transform_0(%arg0: i32) -> (i32, i32) {
    %c0_i32 = arith.constant 0 : i32
    %c0_i32_0 = arith.constant 0 : i32
    return %arg0, %c0_i32 : i32, i32
  }
  func.func @transform_1(%arg0: i32) -> (i32, i32) {
    %c0_i32 = arith.constant 0 : i32
    %c0_i32_0 = arith.constant 0 : i32
    %c0_i32_1 = arith.constant 0 : i32
    return %c0_i32, %c0_i32_0 : i32, i32
  }
  func.func @transform_2(%arg0: i32) -> (i32, i32) {
    %c0_i32 = arith.constant 0 : i32
    %c0_i32_0 = arith.constant 0 : i32
    %c0_i32_1 = arith.constant 0 : i32
    return %c0_i32, %c0_i32_0 : i32, i32
  }
  func.func @transform_3(%arg0: i32) -> (i32, i32) {
    %c0_i32 = arith.constant 0 : i32
    %c0_i32_0 = arith.constant 0 : i32
    %c0_i32_1 = arith.constant 0 : i32
    return %c0_i32, %c0_i32_0 : i32, i32
  }
  func.func @transform_4(%arg0: i32) -> (i32, i32) {
    %c0_i32 = arith.constant 0 : i32
    %c0_i32_0 = arith.constant 0 : i32
    %c0_i32_1 = arith.constant 0 : i32
    return %c0_i32, %c0_i32_0 : i32, i32
  }
  func.func @transform_5(%arg0: i32) -> (i32, i32) {
    %c0_i32 = arith.constant 0 : i32
    %c0_i32_0 = arith.constant 0 : i32
    %c0_i32_1 = arith.constant 0 : i32
    return %c0_i32, %c0_i32_0 : i32, i32
  }
  func.func @transform_6(%arg0: i32) -> (i32, i32) {
    %c0_i32 = arith.constant 0 : i32
    %c0_i32_0 = arith.constant 0 : i32
    %c0_i32_1 = arith.constant 0 : i32
    return %c0_i32, %c0_i32_0 : i32, i32
  }
  func.func @transform_7(%arg0: i32) -> (i32, i32) {
    %c0_i32 = arith.constant 0 : i32
    %c0_i32_0 = arith.constant 0 : i32
    return %arg0, %c0_i32 : i32, i32
  }
}

</mosaic_0001>

<llo_original>
// kernel: qnetwork_forward.1
$region0: #{qnetwork_forward.1}
  #allocation0 [shape = 'u32[]', space=smem, size = 0x4, offset = 0x4, fixed_abs, tag = 'smem constant byte address 0x4 - core index']
  #allocation1 [shape = 'u32[72,128]{1,0:T(1,128)}', space=vmem, size = 0x9000, scoped, tag = 'internal scratch']
  %s0 = inlined_call_operand.vmem [shape: bf16[16,8], index: 0, kind: input, shape index: {}]
  %s1 = inlined_call_operand.vmem [shape: bf16[8,128], index: 1, kind: input, shape index: {}]
  %s2 = inlined_call_operand.vmem [shape: f32[1,128], index: 2, kind: input, shape index: {}]
  %s3 = inlined_call_operand.vmem [shape: bf16[128,128], index: 3, kind: input, shape index: {}]
  %s4 = inlined_call_operand.vmem [shape: f32[1,128], index: 4, kind: input, shape index: {}]
  %s5 = inlined_call_operand.vmem [shape: bf16[128,4], index: 5, kind: input, shape index: {}]
  %s6 = inlined_call_operand.vmem [shape: f32[1,4], index: 6, kind: input, shape index: {}]
  %s7 = inlined_call_operand.vmem [shape: f32[16,4], index: 7, kind: output, shape index: {}]
  %s8 = sld [smem:[#allocation0]]
  $region38: #{qnetwork_forward.1} parent=0
    _
  %s10 = ssub.s32 1, %s8
  %s11 = scalar_select 0, %s10, %s8
  // Predicated region
  $region2: #{qnetwork_forward.1} parent=0 // pred_check
    _
  $region3: #{qnetwork_forward.1} parent=0 // pred_check_branch
    %13 = sbr.rel (0) target = $region5
  $region4: #{qnetwork_forward.1} parent=0 // pred_region
    _
  $region5: #{qnetwork_forward.1} parent=0 // pred_fallthru
    _
  // Predicated region
  $region6: #{qnetwork_forward.1} parent=0 // pred_check
    _
  $region7: #{qnetwork_forward.1} parent=0 // pred_check_branch
    %15 = sbr.rel (0) target = $region9
  $region8: #{qnetwork_forward.1} parent=0 // pred_region
    _
  $region9: #{qnetwork_forward.1} parent=0 // pred_fallthru
    _
  // Predicated region
  $region10: #{qnetwork_forward.1} parent=0 // pred_check
    _
  $region11: #{qnetwork_forward.1} parent=0 // pred_check_branch
    %17 = sbr.rel (0) target = $region13
  $region12: #{qnetwork_forward.1} parent=0 // pred_region
    _
  $region13: #{qnetwork_forward.1} parent=0 // pred_fallthru
    _
  // Predicated region
  $region14: #{qnetwork_forward.1} parent=0 // pred_check
    _
  $region15: #{qnetwork_forward.1} parent=0 // pred_check_branch
    %19 = sbr.rel (0) target = $region17
  $region16: #{qnetwork_forward.1} parent=0 // pred_region
    _
  $region17: #{qnetwork_forward.1} parent=0 // pred_fallthru
    _
  // Predicated region
  $region18: #{qnetwork_forward.1} parent=0 // pred_check
    _
  $region19: #{qnetwork_forward.1} parent=0 // pred_check_branch
    %21 = sbr.rel (0) target = $region21
  $region20: #{qnetwork_forward.1} parent=0 // pred_region
    _
  $region21: #{qnetwork_forward.1} parent=0 // pred_fallthru
    _
  // Predicated region
  $region22: #{qnetwork_forward.1} parent=0 // pred_check
    _
  $region23: #{qnetwork_forward.1} parent=0 // pred_check_branch
    %23 = sbr.rel (0) target = $region25
  $region24: #{qnetwork_forward.1} parent=0 // pred_region
    _
  $region25: #{qnetwork_forward.1} parent=0 // pred_fallthru
    _
  // Predicated region
  $region26: #{qnetwork_forward.1} parent=0 // pred_check
    _
  $region27: #{qnetwork_forward.1} parent=0 // pred_check_branch
    %25 = sbr.rel (0) target = $region29
  $region28: #{qnetwork_forward.1} parent=0 // pred_region
    _
  $region29: #{qnetwork_forward.1} parent=0 // pred_fallthru
    _
  %v27 = vld [vmem:[%s0] sm:$0xf]
  %v28 = vld [vmem:[%s0 + $0x4] sm:$0xf]
  %v29 = vld [vmem:[%s1] sm:$0xf]
  %v30 = vld [vmem:[%s2] sm:$0x1]
  %v32 = vperm.slane %v30, 0
  %v36 = vunpack.c.l.b16 %v27
  %v37 = vunpack.c.l.b16 %v28
  %v38 = vpack.c.b16 %v37, %v36
  %vm39 = vcmask 64512
  %v41 = vsel %vm39, %v38, 0
  %vm43 = vcmask 1043456
  %v45 = vsel %vm43, %v29, 0
  %47 = vmatpush.bf16.msra.mxu0 0
  %48 = vmatpush.bf16.msra.mxu0 0
  %49 = vmatpush.bf16.msra.mxu0 0
  %50 = vmatpush.bf16.msra.mxu0 0
  %51 = vmatpush.bf16.msra.mxu0 0
  %52 = vmatpush.bf16.msra.mxu0 0
  %53 = vmatpush.bf16.msra.mxu0 0
  %54 = vmatpush.bf16.msra.mxu0 %v45
  %55 = vmatmul.bf16.gmra.mxu0 %v41
  %v56 = vpop.f32.mrf.mxu0
  %v57 = vadd.f32 %v32, %v56
  %v58 = vpop.f32.mrf.mxu0
  %v59 = vadd.f32 %v32, %v58
  %60 = vdwg.mxu0
  %v61 = vmax.f32 %v57, 0.0
  %v62 = vmax.f32 %v59, 0.0
  %v63 = vpack.c.bf16 %v62, %v61
  %v64 = vld [vmem:[%s3] sm:$0xf]
  %v65 = vld [vmem:[%s3 + $0x4] sm:$0xf]
  %v66 = vld [vmem:[%s3 + $0x8] sm:$0xf]
  %v67 = vld [vmem:[%s3 + $0xc] sm:$0xf]
  %v68 = vld [vmem:[%s3 + $0x10] sm:$0xf]
  %v69 = vld [vmem:[%s3 + $0x14] sm:$0xf]
  %v70 = vld [vmem:[%s3 + $0x18] sm:$0xf]
  %v71 = vld [vmem:[%s3 + $0x1c] sm:$0xf]
  %v72 = vld [vmem:[%s3 + $0x20] sm:$0xf]
  %v73 = vld [vmem:[%s3 + $0x24] sm:$0xf]
  %v74 = vld [vmem:[%s3 + $0x28] sm:$0xf]
  %v75 = vld [vmem:[%s3 + $0x2c] sm:$0xf]
  %v76 = vld [vmem:[%s3 + $0x30] sm:$0xf]
  %v77 = vld [vmem:[%s3 + $0x34] sm:$0xf]
  %v78 = vld [vmem:[%s3 + $0x38] sm:$0xf]
  %v79 = vld [vmem:[%s3 + $0x3c] sm:$0xf]
  %v80 = vld [vmem:[%s4] sm:$0x1]
  %v82 = vperm.slane %v80, 0
  %v100 = vunpack.c.l.b16 %v64
  %v101 = vunpack.c.l.b16 %v65
  %v102 = vunpack.c.l.b16 %v66
  %v103 = vunpack.c.l.b16 %v67
  %v104 = vunpack.c.l.b16 %v68
  %v105 = vunpack.c.l.b16 %v69
  %v106 = vunpack.c.l.b16 %v70
  %v107 = vunpack.c.l.b16 %v71
  %v108 = vunpack.c.l.b16 %v72
  %v109 = vunpack.c.l.b16 %v73
  %v110 = vunpack.c.l.b16 %v74
  %v111 = vunpack.c.l.b16 %v75
  %v112 = vunpack.c.l.b16 %v76
  %v113 = vunpack.c.l.b16 %v77
  %v114 = vunpack.c.l.b16 %v78
  %v115 = vunpack.c.l.b16 %v79
  %v116 = vpack.c.b16 %v101, %v100
  %v117 = vpack.c.b16 %v103, %v102
  %v118 = vpack.c.b16 %v105, %v104
  %v119 = vpack.c.b16 %v107, %v106
  %v120 = vpack.c.b16 %v109, %v108
  %v121 = vpack.c.b16 %v111, %v110
  %v122 = vpack.c.b16 %v113, %v112
  %v123 = vpack.c.b16 %v115, %v114
  %132 = vmatpush.bf16.msra.mxu0 %v123
  %133 = vmatpush.bf16.msra.mxu0 %v122
  %134 = vmatpush.bf16.msra.mxu0 %v121
  %135 = vmatpush.bf16.msra.mxu0 %v120
  %136 = vmatpush.bf16.msra.mxu0 %v119
  %137 = vmatpush.bf16.msra.mxu0 %v118
  %138 = vmatpush.bf16.msra.mxu0 %v117
  %139 = vmatpush.bf16.msra.mxu0 %v116
  %140 = vmatmul.bf16.gmra.mxu0 %v63
  %v141 = vpop.f32.mrf.mxu0
  %v142 = vadd.f32 %v82, %v141
  %v143 = vpop.f32.mrf.mxu0
  %v144 = vadd.f32 %v82, %v143
  %145 = vdwg.mxu0
  %v146 = vmax.f32 %v142, 0.0
  %v147 = vmax.f32 %v144, 0.0
  %v148 = vpack.c.bf16 %v147, %v146
  %v149 = vld [vmem:[%s5] sm:$0xf]
  %v150 = vld [vmem:[%s5 + $0x4] sm:$0xf]
  %v151 = vld [vmem:[%s5 + $0x8] sm:$0xf]
  %v152 = vld [vmem:[%s5 + $0xc] sm:$0xf]
  %v153 = vld [vmem:[%s5 + $0x10] sm:$0xf]
  %v154 = vld [vmem:[%s5 + $0x14] sm:$0xf]
  %v155 = vld [vmem:[%s5 + $0x18] sm:$0xf]
  %v156 = vld [vmem:[%s5 + $0x1c] sm:$0xf]
  %v157 = vld [vmem:[%s5 + $0x20] sm:$0xf]
  %v158 = vld [vmem:[%s5 + $0x24] sm:$0xf]
  %v159 = vld [vmem:[%s5 + $0x28] sm:$0xf]
  %v160 = vld [vmem:[%s5 + $0x2c] sm:$0xf]
  %v161 = vld [vmem:[%s5 + $0x30] sm:$0xf]
  %v162 = vld [vmem:[%s5 + $0x34] sm:$0xf]
  %v163 = vld [vmem:[%s5 + $0x38] sm:$0xf]
  %v164 = vld [vmem:[%s5 + $0x3c] sm:$0xf]
  %v165 = vld [vmem:[%s6] sm:$0x1]
  %v167 = vperm.slane %v165, 0
  %v185 = vunpack.c.l.b16 %v149
  %v186 = vunpack.c.l.b16 %v150
  %v187 = vunpack.c.l.b16 %v151
  %v188 = vunpack.c.l.b16 %v152
  %v189 = vunpack.c.l.b16 %v153
  %v190 = vunpack.c.l.b16 %v154
  %v191 = vunpack.c.l.b16 %v155
  %v192 = vunpack.c.l.b16 %v156
  %v193 = vunpack.c.l.b16 %v157
  %v194 = vunpack.c.l.b16 %v158
  %v195 = vunpack.c.l.b16 %v159
  %v196 = vunpack.c.l.b16 %v160
  %v197 = vunpack.c.l.b16 %v161
  %v198 = vunpack.c.l.b16 %v162
  %v199 = vunpack.c.l.b16 %v163
  %v200 = vunpack.c.l.b16 %v164
  %v201 = vpack.c.b16 %v186, %v185
  %v202 = vpack.c.b16 %v188, %v187
  %v203 = vpack.c.b16 %v190, %v189
  %v204 = vpack.c.b16 %v192, %v191
  %v205 = vpack.c.b16 %v194, %v193
  %v206 = vpack.c.b16 %v196, %v195
  %v207 = vpack.c.b16 %v198, %v197
  %v208 = vpack.c.b16 %v200, %v199
  %217 = vmatpush.bf16.msra.mxu0 %v208
  %218 = vmatpush.bf16.msra.mxu0 %v207
  %219 = vmatpush.bf16.msra.mxu0 %v206
  %220 = vmatpush.bf16.msra.mxu0 %v205
  %221 = vmatpush.bf16.msra.mxu0 %v204
  %222 = vmatpush.bf16.msra.mxu0 %v203
  %223 = vmatpush.bf16.msra.mxu0 %v202
  %224 = vmatpush.bf16.msra.mxu0 %v201
  %225 = vmatmul.bf16.gmra.mxu0 %v148
  %v226 = vpop.f32.mrf.mxu0
  %v227 = vadd.f32 %v167, %v226
  %v228 = vpop.f32.mrf.mxu0
  %v229 = vadd.f32 %v167, %v228
  %230 = vdwg.mxu0
  %vm231 = vcmask 31744
  %232 = vst.msk [vmem:[%s7] sm:$0xff] %vm231, %v227
  %233 = vst.msk [vmem:[%s7 + $0x8] sm:$0xff] %vm231, %v229
  // Predicated region
  $region30: #{qnetwork_forward.1} parent=0 // pred_check
    _
  $region31: #{qnetwork_forward.1} parent=0 // pred_check_branch
    %235 = sbr.rel (0) target = $region33
  $region32: #{qnetwork_forward.1} parent=0 // pred_region
    _
  $region33: #{qnetwork_forward.1} parent=0 // pred_fallthru
    _
  // Predicated region
  $region34: #{qnetwork_forward.1} parent=0 // pred_check
    _
  $region35: #{qnetwork_forward.1} parent=0 // pred_check_branch
    %237 = sbr.rel (0) target = $region37
  $region36: #{qnetwork_forward.1} parent=0 // pred_region
    _
  $region37: #{qnetwork_forward.1} parent=0 // pred_fallthru
    _

</llo_original>
